<compile_context>
chip_gen: v7x
topology: tpu7x:2x2x1
jax: 0.10.0
libtpu: 0.0.40
codegen_flags: <defaults>
</compile_context>

<pallas_src>
import functools
import math

import jax
import jax.numpy as jnp
from jax.experimental import pallas as pl
from jax.experimental.pallas import tpu as pltpu


# ----------------------------------------------------------------------------
# Kernel 1: fused im2col-GEMM conv (3x3, stride 2, pad 1) + bias + LeakyReLU
# ----------------------------------------------------------------------------
def _conv_gemm_lrelu_kernel(p_ref, w_ref, b_ref, o_ref, *, slope):
    # p_ref: (TM, 9*Cin)   im2col patches for TM output pixels
    # w_ref: (9*Cin, Cout) reshaped conv weight (resident across the grid)
    # b_ref: (1, Cout)
    # o_ref: (TM, Cout)
    acc = jnp.dot(p_ref[...], w_ref[...], preferred_element_type=jnp.float32)
    acc = acc + b_ref[...].astype(jnp.float32)
    acc = jnp.where(acc > 0, acc, acc * slope)          # LeakyReLU on the VPU
    o_ref[...] = acc.astype(o_ref.dtype)


def _im2col_s2(x_nhwc):
    """3x3 / stride-2 / pad-1 patch extraction (layout plumbing, wrapper side)."""
    n, h, w, c = x_nhwc.shape
    ho = (h + 2 - 3) // 2 + 1
    wo = (w + 2 - 3) // 2 + 1
    xp = jnp.pad(x_nhwc, ((0, 0), (1, 1), (1, 1), (0, 0)))
    cols = []
    for ky in range(3):
        for kx in range(3):
            cols.append(xp[:, ky:ky + 2 * ho:2, kx:kx + 2 * wo:2, :])
    patches = jnp.concatenate(cols, axis=-1)            # (N, Ho, Wo, 9*C)
    return patches.reshape(n, ho * wo, 9 * c), ho, wo


def _pick_row_tile(hwo, k, cout, dtype_bytes=4, budget=24 << 20, cap=1024):
    """Largest power-of-two divisor of hwo (>=8) fitting a VMEM budget."""
    if hwo <= 8:
        return hwo                                      # full-dim block is allowed
    fixed = 2 * k * cout * dtype_bytes                  # double-buffered weight
    per_row = 2 * (k + cout) * dtype_bytes              # patches + out, double-buffered
    row_cap = max(8, (budget - fixed) // max(per_row, 1))
    row_cap = min(row_cap, cap)
    t = 1
    while t * 2 <= hwo and hwo % (t * 2) == 0:          # largest pow2 divisor of hwo
        t *= 2
    while t > 8 and t > row_cap:
        t //= 2
    return t if t >= 8 else hwo


def conv3x3_s2_lrelu(x_nhwc, w_oihw, bias, *, slope=0.01):
    """Conv2d(k=3, s=2, p=1) + LeakyReLU(slope) on NHWC input, via Pallas GEMM."""
    n, h, w, cin = x_nhwc.shape
    cout = w_oihw.shape[0]
    patches, ho, wo = _im2col_s2(x_nhwc)                # (N, HWo, 9*Cin)
    k = 9 * cin
    hwo = ho * wo

    # (Cout, Cin, 3, 3) -> (ky, kx, Cin, Cout) -> (9*Cin, Cout); matches the
    # (ky, kx)-outer / ci-inner column order produced by _im2col_s2.
    w_mat = jnp.transpose(w_oihw, (2, 3, 1, 0)).reshape(k, cout)
    b_row = bias.reshape(1, cout)

    tm = _pick_row_tile(hwo, k, cout)
    grid = (n, hwo // tm)

    # VMEM headroom for the biggest blocks (weight resident + double-buffered
    # patches/outputs), capped well under v7x's 64 MiB physical VMEM.
    vmem_bytes = 2 * k * cout * 4 + 2 * tm * (k + cout) * 4 + (2 << 20)
    vmem_limit = int(min(max(vmem_bytes, 32 << 20), 60 << 20))

    kernel = functools.partial(_conv_gemm_lrelu_kernel, slope=slope)
    out = pl.pallas_call(
        kernel,
        out_shape=jax.ShapeDtypeStruct((n, hwo, cout), x_nhwc.dtype),
        grid=grid,
        in_specs=[
            pl.BlockSpec((None, tm, k), lambda b, m: (b, m, 0)),   # patches
            pl.BlockSpec((k, cout), lambda b, m: (0, 0)),          # weight (resident)
            pl.BlockSpec((1, cout), lambda b, m: (0, 0)),          # bias   (resident)
        ],
        out_specs=pl.BlockSpec((None, tm, cout), lambda b, m: (b, m, 0)),
        compiler_params=pltpu.CompilerParams(
            dimension_semantics=("parallel", "parallel"),
            vmem_limit_bytes=vmem_limit),
    )(patches, w_mat, b_row)
    return out.reshape(n, ho, wo, cout)


# ----------------------------------------------------------------------------
# Kernel 2: EqualLinear (no activation): y = x @ (W * scale).T + b * lr_mul
# ----------------------------------------------------------------------------
def _equal_linear_kernel(x_ref, wt_ref, b_ref, o_ref, *, scale, lr_mul):
    x = x_ref[...]                                       # (N, in_dim)
    w = wt_ref[...] * jnp.asarray(scale, wt_ref.dtype)   # (in_dim, out_dim)
    out = jnp.dot(x, w, preferred_element_type=jnp.float32)
    out = out + b_ref[...].astype(jnp.float32) * lr_mul
    o_ref[...] = out.astype(o_ref.dtype)


def equal_linear(x, weight_oi, bias, *, lr_mul=1.0):
    n, in_dim = x.shape
    out_dim = weight_oi.shape[0]
    scale = (1.0 / math.sqrt(in_dim)) * lr_mul
    w_t = jnp.transpose(weight_oi)                       # (in_dim, out_dim): lane-dense out
    b_row = bias.reshape(1, out_dim)
    kernel = functools.partial(_equal_linear_kernel, scale=scale, lr_mul=lr_mul)
    return pl.pallas_call(
        kernel,
        out_shape=jax.ShapeDtypeStruct((n, out_dim), x.dtype),
    )(x, w_t, b_row)


# ----------------------------------------------------------------------------
# Full GradualStyleBlock forward
# ----------------------------------------------------------------------------
def gradual_style_block_forward(x_nchw, conv_ws, conv_bs, lin_w, lin_b, *, lr_mul=1.0):
    # NCHW -> NHWC: feature axis goes on lanes for every kernel.
    x = jnp.transpose(x_nchw, (0, 2, 3, 1))
    for w, b in zip(conv_ws, conv_bs):
        x = conv3x3_s2_lrelu(x, w, b, slope=0.01)        # nn.LeakyReLU() default slope
    n = x.shape[0]
    out_c = x.shape[-1]
    x = x.reshape(n, out_c)                              # final spatial is 1x1
    return equal_linear(x, lin_w, lin_b, lr_mul=lr_mul)


if __name__ == "__main__":
    key = jax.random.PRNGKey(0)
    N, in_c, out_c, spatial = 2, 4, 32, 16
    num_pools = int(math.log2(spatial))                  # 4 convs: 16->8->4->2->1

    keys = jax.random.split(key, 2 * num_pools + 3)
    x = jax.random.normal(keys[0], (N, in_c, spatial, spatial), dtype=jnp.float32)

    conv_ws, conv_bs = [], []
    c_in = in_c
    for i in range(num_pools):
        fan_in = c_in * 9
        conv_ws.append(jax.random.normal(keys[1 + 2 * i], (out_c, c_in, 3, 3),
                                         dtype=jnp.float32) / math.sqrt(fan_in))
        conv_bs.append(0.1 * jax.random.normal(keys[2 + 2 * i], (out_c,),
                                               dtype=jnp.float32))
        c_in = out_c

    lin_w = jax.random.normal(keys[-2], (out_c, out_c), dtype=jnp.float32)
    lin_b = 0.1 * jax.random.normal(keys[-1], (out_c,), dtype=jnp.float32)

    out = jax.block_until_ready(
        gradual_style_block_forward(x, conv_ws, conv_bs, lin_w, lin_b, lr_mul=1.0))

    # Pure-JAX (XLA) reference with identical math.
    def ref_forward(xr):
        y = xr
        for w, b in zip(conv_ws, conv_bs):
            y = jax.lax.conv_general_dilated(
                y, w, window_strides=(2, 2), padding=((1, 1), (1, 1)),
                dimension_numbers=("NCHW", "OIHW", "NCHW"))
            y = y + b.reshape(1, -1, 1, 1)
            y = jnp.where(y > 0, y, 0.01 * y)
        y = y.reshape(y.shape[0], -1)
        scale = 1.0 / math.sqrt(out_c)
        return y @ (lin_w * scale).T + lin_b

    ref = ref_forward(x)

    assert out.shape == (N, out_c) and out.dtype == x.dtype
    # Tolerance accounts for MXU default-precision f32 matmuls in both paths.
    assert jnp.allclose(out, ref, atol=2e-2, rtol=2e-2), \
        float(jnp.max(jnp.abs(out - ref)))

    print("KERNEL_OK")
</pallas_src>

<mosaic_0001>
module attributes {stable_mosaic.version = 11 : i64} {
  func.func @_conv_gemm_lrelu_kernel(%arg0: i32, %arg1: i32, %arg2: memref<1x64x36xf32, #tpu.memory_space<vmem>>, %arg3: memref<36x32xf32, #tpu.memory_space<vmem>>, %arg4: memref<1x32xf32, #tpu.memory_space<vmem>>, %arg5: memref<1x64x32xf32, #tpu.memory_space<vmem>>) attributes {dimension_semantics = [#tpu.dimension_semantics<parallel>, #tpu.dimension_semantics<parallel>], iteration_bounds = array<i64: 2, 1>, scalar_prefetch = 0 : i64, scratch_operands = 0 : i64, tpu.core_type = #tpu.core_type<tc>, window_params = [{transform_indices = @transform_0, window_bounds = array<i64: 1, 64, 36>}, {pipeline_mode = #tpu.pipeline_mode<synchronous>, transform_indices = @transform_1, window_bounds = array<i64: 36, 32>}, {pipeline_mode = #tpu.pipeline_mode<synchronous>, transform_indices = @transform_2, window_bounds = array<i64: 1, 32>}, {transform_indices = @transform_3, window_bounds = array<i64: 1, 64, 32>}]} {
    %c0 = arith.constant 0 : index
    %c0_0 = arith.constant 0 : index
    %c0_1 = arith.constant 0 : index
    %0 = vector.load %arg2[%c0, %c0_0, %c0_1] : memref<1x64x36xf32, #tpu.memory_space<vmem>>, vector<1x64x36xf32>
    %1 = vector.shape_cast %0 : vector<1x64x36xf32> to vector<64x36xf32>
    %c0_2 = arith.constant 0 : index
    %c0_3 = arith.constant 0 : index
    %2 = vector.load %arg3[%c0_2, %c0_3] : memref<36x32xf32, #tpu.memory_space<vmem>>, vector<36x32xf32>
    %cst = arith.constant dense<0.000000e+00> : vector<64x32xf32>
    %3 = tpu.matmul %1, %2, %cst {dimension_numbers = #tpu.dot_dimension_numbers<[1], [0], [0], [1], [0, 0, 1, 1], [], []>} : vector<64x36xf32>, vector<36x32xf32>, vector<64x32xf32> -> vector<64x32xf32>
    %c0_4 = arith.constant 0 : index
    %c0_5 = arith.constant 0 : index
    %4 = vector.load %arg4[%c0_4, %c0_5] : memref<1x32xf32, #tpu.memory_space<vmem>>, vector<1x32xf32>
    %5 = vector.broadcast %4 : vector<1x32xf32> to vector<64x32xf32>
    %6 = arith.addf %3, %5 : vector<64x32xf32>
    %cst_6 = arith.constant 0.000000e+00 : f32
    %7 = vector.broadcast %cst_6 : f32 to vector<64x32xf32>
    %8 = arith.cmpf ogt, %6, %7 : vector<64x32xf32>
    %cst_7 = arith.constant 0.00999999977 : f32
    %9 = vector.broadcast %cst_7 : f32 to vector<64x32xf32>
    %10 = arith.mulf %6, %9 : vector<64x32xf32>
    %11 = arith.select %8, %6, %10 : vector<64x32xi1>, vector<64x32xf32>
    %c0_8 = arith.constant 0 : index
    %c0_9 = arith.constant 0 : index
    %c0_10 = arith.constant 0 : index
    %12 = vector.load %arg5[%c0_8, %c0_9, %c0_10] : memref<1x64x32xf32, #tpu.memory_space<vmem>>, vector<1x64x32xf32>
    %13 = vector.shape_cast %12 : vector<1x64x32xf32> to vector<64x32xf32>
    %14 = vector.shape_cast %11 : vector<64x32xf32> to vector<1x64x32xf32>
    tpu.vector_store %arg5[%c0_8, %c0_9, %c0_10], %14 {strides = array<i32>} : memref<1x64x32xf32, #tpu.memory_space<vmem>>, vector<1x64x32xf32>,
    return
  }
  func.func @transform_0(%arg0: i32, %arg1: i32) -> (i32, i32, i32) {
    %c0_i32 = arith.constant 0 : i32
    %c0_i32_0 = arith.constant 0 : i32
    return %arg0, %arg1, %c0_i32 : i32, i32, i32
  }
  func.func @transform_1(%arg0: i32, %arg1: i32) -> (i32, i32) {
    %c0_i32 = arith.constant 0 : i32
    %c0_i32_0 = arith.constant 0 : i32
    %c0_i32_1 = arith.constant 0 : i32
    return %c0_i32, %c0_i32_0 : i32, i32
  }
  func.func @transform_2(%arg0: i32, %arg1: i32) -> (i32, i32) {
    %c0_i32 = arith.constant 0 : i32
    %c0_i32_0 = arith.constant 0 : i32
    %c0_i32_1 = arith.constant 0 : i32
    return %c0_i32, %c0_i32_0 : i32, i32
  }
  func.func @transform_3(%arg0: i32, %arg1: i32) -> (i32, i32, i32) {
    %c0_i32 = arith.constant 0 : i32
    %c0_i32_0 = arith.constant 0 : i32
    return %arg0, %arg1, %c0_i32 : i32, i32, i32
  }
}

</mosaic_0001>

<llo_original>
// kernel: tpu_custom_call.1
$region0: #{tpu_custom_call.1}
  #allocation0 [shape = 'u32[]', space=smem, size = 0x4, offset = 0x4, fixed_abs, tag = 'smem constant byte address 0x4 - core index']
  #allocation1 [shape = 'u32[144,128]{1,0:T(1,128)}', space=vmem, size = 0x12000, scoped, tag = 'internal scratch']
  %s0 = inlined_call_operand.vmem [shape: f32[2,64,36], index: 0, kind: input, shape index: {}]
  %s1 = inlined_call_operand.vmem [shape: f32[36,32], index: 1, kind: input, shape index: {}]
  %s2 = inlined_call_operand.vmem [shape: f32[1,32], index: 2, kind: input, shape index: {}]
  %s3 = inlined_call_operand.vmem [shape: f32[2,64,32], index: 3, kind: output, shape index: {}]
  %s4 = sld [smem:[#allocation0]]
  $region45: #{tpu_custom_call.1} parent=0
    _
  %s6 = ssub.s32 1, %s4
  %s7 = scalar_select 0, %s6, %s4
  loop: start=0, step=1, limit=4
  $region2: #{tpu_custom_call.1} parent=0 // loop_pre_header
    _
  $region3: #{tpu_custom_call.1} parent=0 // loop_header
    %s9 = sphi 0, %s13
    %p10 = scmp.ge.s32.totalorder %s9, 4
    %s16 = sphi 0, %s28
    %s17 = sphi 0, %s24
    %s18 = sphi 0, %s16
    %s19 = sphi 0, %s17
    %s20 = sphi 0, %s18
    %s21 = sphi 0, %s19
    %s33 = sphi 0, %s35
    %s36 = sphi 0, %s33
    %s37 = sphi 0, %s36
    %s53 = sphi 0, %s37
    %s57 = sphi 0, %s57
    %s59 = sphi 0, %s57
    %s60 = sphi 0, %s59
    %s74 = sphi 0, %s60
    %s78 = sphi 0, %s78
    %s80 = sphi 0, %s78
    %s81 = sphi 0, %s80
    %s95 = sphi 0, %s81
    %s103 = sphi 0, %s105
    %s106 = sphi 0, %s103
    %s107 = sphi 0, %s106
    %s123 = sphi 0, %s107
  $region4: #{tpu_custom_call.1} parent=0 // loop_header_branch
    %12 = sbr.rel (%p10) target = $region8
  $region5: #{tpu_custom_call.1} parent=0 // loop_body
    %s14 = ssub.s32 %s9, 1
    %s15 = ssub.s32 %s9, 2
    %s22 = sadd.s32 1, %s17
    %p23 = scmp.ge.s32.totalorder %s22, 1
    %s24 = scalar_select %p23, 0, %s22
    %s25 = sadd.s32 1, %s16
    %s26 = scalar_select %p23, %s25, %s16
    %p27 = scmp.ge.s32.totalorder %s26, 2
    %s28 = scalar_select %p27, 0, %s26
    %s29 = ssub.s32 %s16, %s28
    %s30 = ssub.s32 %s17, %s24
    %s31 = sor.u32 %s29, %s30
    %p32 = scmp.eq.s32.totalorder %s31, 0
    %s34 = sadd.s32 %s33, 1
    %s35 = scalar_select %p32, %s33, %s34
    %p38 = pneg %p32
    %p39 = scmp.eq.s32.totalorder %s9, 1
    %p40 = por %p38, %p39
    %p41 = scmp.ne.s32.totalorder %s33, %s36
    %p42 = scmp.eq.s32.totalorder %s9, 0
    %p43 = por %p41, %p42
    %p44 = scmp.ne.s32.totalorder %s33, %s36
    %p45 = scmp.eq.s32.totalorder %s14, 1
    %p46 = por %p44, %p45
    %p47 = scmp.ne.s32.totalorder %s36, %s37
    %p48 = scmp.eq.s32.totalorder %s14, 0
    %p49 = por %p47, %p48
    %p50 = scmp.ne.s32.totalorder %s36, %s37
    %p51 = scmp.eq.s32.totalorder %s15, 1
    %p52 = por %p50, %p51
    %p54 = scmp.ne.s32.totalorder %s37, %s53
    %p55 = scmp.eq.s32.totalorder %s15, 0
    %p56 = por %p54, %p55
    %s58 = sadd.s32 %s57, 1
    %p61 = scmp.eq.s32.totalorder %s9, 1
    %p62 = scmp.ne.s32.totalorder %s57, %s59
    %p63 = scmp.eq.s32.totalorder %s9, 0
    %p64 = por %p62, %p63
    %p65 = scmp.ne.s32.totalorder %s57, %s59
    %p66 = scmp.eq.s32.totalorder %s14, 1
    %p67 = por %p65, %p66
    %p68 = scmp.ne.s32.totalorder %s59, %s60
    %p69 = scmp.eq.s32.totalorder %s14, 0
    %p70 = por %p68, %p69
    %p71 = scmp.ne.s32.totalorder %s59, %s60
    %p72 = scmp.eq.s32.totalorder %s15, 1
    %p73 = por %p71, %p72
    %p75 = scmp.ne.s32.totalorder %s60, %s74
    %p76 = scmp.eq.s32.totalorder %s15, 0
    %p77 = por %p75, %p76
    %s79 = sadd.s32 %s78, 1
    %p82 = scmp.eq.s32.totalorder %s9, 1
    %p83 = scmp.ne.s32.totalorder %s78, %s80
    %p84 = scmp.eq.s32.totalorder %s9, 0
    %p85 = por %p83, %p84
    %p86 = scmp.ne.s32.totalorder %s78, %s80
    %p87 = scmp.eq.s32.totalorder %s14, 1
    %p88 = por %p86, %p87
    %p89 = scmp.ne.s32.totalorder %s80, %s81
    %p90 = scmp.eq.s32.totalorder %s14, 0
    %p91 = por %p89, %p90
    %p92 = scmp.ne.s32.totalorder %s80, %s81
    %p93 = scmp.eq.s32.totalorder %s15, 1
    %p94 = por %p92, %p93
    %p96 = scmp.ne.s32.totalorder %s81, %s95
    %p97 = scmp.eq.s32.totalorder %s15, 0
    %p98 = por %p96, %p97
    %s99 = ssub.s32 %s16, %s28
    %s100 = ssub.s32 %s17, %s24
    %s101 = sor.u32 %s99, %s100
    %p102 = scmp.eq.s32.totalorder %s101, 0
    %s104 = sadd.s32 %s103, 1
    %s105 = scalar_select %p102, %s103, %s104
    %p108 = pneg %p102
    %p109 = scmp.eq.s32.totalorder %s9, 1
    %p110 = por %p108, %p109
    %p111 = scmp.ne.s32.totalorder %s103, %s106
    %p112 = scmp.eq.s32.totalorder %s9, 0
    %p113 = por %p111, %p112
    %p114 = scmp.ne.s32.totalorder %s103, %s106
    %p115 = scmp.eq.s32.totalorder %s14, 1
    %p116 = por %p114, %p115
    %p117 = scmp.ne.s32.totalorder %s106, %s107
    %p118 = scmp.eq.s32.totalorder %s14, 0
    %p119 = por %p117, %p118
    %p120 = scmp.ne.s32.totalorder %s106, %s107
    %p121 = scmp.eq.s32.totalorder %s15, 1
    %p122 = por %p120, %p121
    %p124 = scmp.ne.s32.totalorder %s107, %s123
    %p125 = scmp.eq.s32.totalorder %s15, 0
    %p126 = por %p124, %p125
    %p127 = scmp.le.s32.totalorder 1, %s9
    %p128 = scmp.lt.s32.totalorder %s9, 3
    %p129 = pnand %p127, %p128
    %p130 = pneg %p129
    // Predicated region
    $region9: #{tpu_custom_call.1} parent=5 // pred_check
      _
    $region10: #{tpu_custom_call.1} parent=5 // pred_check_branch
      %132 = sbr.rel (%p129) target = $region12
    $region11: #{tpu_custom_call.1} parent=5 // pred_region
      %s133 = ssub.s32 %s9, 1
      // Predicated region
      $region13: #{tpu_custom_call.1} parent=11 // pred_check
        %p134 = pneg %p70
      $region14: #{tpu_custom_call.1} parent=11 // pred_check_branch
        %136 = sbr.rel (%p134) target = $region16
      $region15: #{tpu_custom_call.1} parent=11 // pred_region
        _
      $region16: #{tpu_custom_call.1} parent=11 // pred_fallthru
        _
      // Predicated region
      $region17: #{tpu_custom_call.1} parent=11 // pred_check
        %p137 = pneg %p91
      $region18: #{tpu_custom_call.1} parent=11 // pred_check_branch
        %139 = sbr.rel (%p137) target = $region20
      $region19: #{tpu_custom_call.1} parent=11 // pred_region
        _
      $region20: #{tpu_custom_call.1} parent=11 // pred_fallthru
        _
    $region12: #{tpu_custom_call.1} parent=5 // pred_fallthru
      _
    %p140 = scmp.lt.s32.totalorder %s9, 2
    // Predicated region
    $region21: #{tpu_custom_call.1} parent=5 // pred_check
      %p141 = pneg %p140
    $region22: #{tpu_custom_call.1} parent=5 // pred_check_branch
      %143 = sbr.rel (%p141) target = $region24
    $region23: #{tpu_custom_call.1} parent=5 // pred_region
      // Predicated region
      $region25: #{tpu_custom_call.1} parent=23 // pred_check
        %p144 = pneg %p43
      $region26: #{tpu_custom_call.1} parent=23 // pred_check_branch
        %146 = sbr.rel (%p144) target = $region28
      $region27: #{tpu_custom_call.1} parent=23 // pred_region
        %s147 = smul.u32 8, %s17
        %p148 = scmp.lt.s32.totalorder %s16, 1
        %s149 = scalar_select %p148, %s16, 1
        %p150 = scmp.lt.s32.totalorder %s147, 7
        %s151 = scalar_select %p150, %s147, 7
        %s152 = smul.addr %s149, 8
        %s153 = sadd.s32 %s151, %s152
        %s154 = smul.addr %s153, 8
        %s155 = scalar_lea.vmem %s0, %s154
        %s156 = smul.u32 8, %s17
      $region28: #{tpu_custom_call.1} parent=23 // pred_fallthru
        _
    $region24: #{tpu_custom_call.1} parent=5 // pred_fallthru
      _
    %p157 = scmp.le.s32.totalorder 1, %s9
    %p158 = scmp.lt.s32.totalorder %s9, 3
    %p159 = pnand %p157, %p158
    %p160 = pneg %p159
    // Predicated region
    $region29: #{tpu_custom_call.1} parent=5 // pred_check
      _
    $region30: #{tpu_custom_call.1} parent=5 // pred_check_branch
      %162 = sbr.rel (%p159) target = $region32
    $region31: #{tpu_custom_call.1} parent=5 // pred_region
      %s163 = ssub.s32 %s9, 1
      %s164 = smul.u32 8, %s19
      %p165 = scmp.lt.s32.totalorder %s18, 1
      %s166 = scalar_select %p165, %s18, 1
      %p167 = scmp.lt.s32.totalorder %s164, 7
      %s168 = scalar_select %p167, %s164, 7
      %s169 = smul.addr %s166, 8
      %s170 = sadd.s32 %s168, %s169
      %s171 = smul.addr %s170, 8
      %s172 = scalar_lea.vmem %s0, %s171
      %p173 = pneg %p49
      %p174 = pneg %p46
      %p175 = pneg %p70
      %p176 = pneg %p67
      %p177 = pneg %p91
      %p178 = pneg %p88
      %p179 = pneg %p119
      %p180 = pneg %p116
      %s181 = smul.u32 8, %s19
      %p182 = scmp.lt.s32.totalorder %s18, 1
      %s183 = scalar_select %p182, %s18, 1
      %p184 = scmp.lt.s32.totalorder %s181, 7
      %s185 = scalar_select %p184, %s181, 7
      %s186 = smul.addr %s183, 8
      %s187 = sadd.s32 %s185, %s186
      %s188 = smul.addr %s187, 8
      %s189 = scalar_lea.vmem %s3, %s188
      %s190 = smul.u32 8, %s19
      %p191 = scmp.lt.s32.totalorder %s18, 1
      %s192 = scalar_select %p191, %s18, 1
      %p193 = scmp.lt.s32.totalorder %s190, 7
      %s194 = scalar_select %p193, %s190, 7
      %s195 = smul.addr %s192, 8
      %s196 = sadd.s32 %s194, %s195
      %s197 = smul.addr %s196, 8
      %s198 = scalar_lea.vmem %s0, %s197
      %s199 = smul.u32 8, %s19
      %s200 = smul.u32 8, %s19
      %p201 = scmp.lt.s32.totalorder %s18, 1
      %s202 = scalar_select %p201, %s18, 1
      %p203 = scmp.lt.s32.totalorder %s200, 7
      %s204 = scalar_select %p203, %s200, 7
      %s205 = smul.addr %s202, 8
      %s206 = sadd.s32 %s204, %s205
      %s207 = smul.addr %s206, 8
      %s208 = scalar_lea.vmem %s3, %s207
      %s209 = smul.u32 8, %s19
      %v210 = vld [vmem:[%s198] sm:$0xff]
      %v211 = vld [vmem:[%s198 + $0x8] sm:$0xff]
      %v212 = vld [vmem:[%s198 + $0x10] sm:$0xff]
      %v213 = vld [vmem:[%s198 + $0x18] sm:$0xff]
      %v214 = vld [vmem:[%s198 + $0x20] sm:$0xff]
      %v215 = vld [vmem:[%s198 + $0x28] sm:$0xff]
      %v216 = vld [vmem:[%s198 + $0x30] sm:$0xff]
      %v217 = vld [vmem:[%s198 + $0x38] sm:$0xff]
      %v218 = vld [vmem:[%s1] sm:$0xff]
      %v219 = vld [vmem:[%s1 + $0x8] sm:$0xff]
      %v220 = vld [vmem:[%s1 + $0x10] sm:$0xff]
      %v221 = vld [vmem:[%s1 + $0x18] sm:$0xff]
      %v222 = vld [vmem:[%s1 + $0x20] sm:$0xf]
      %v223 = vld [vmem:[%s2] sm:$0x1]
      %v225 = vlaneseq
      %v226 = vshrl.u32 %v225, 7
      %v227 = vsub.s32 0, %v226
      %v228 = vrot.slane %v223, %v227
      %vm230 = vcmask 293888
      %v232 = vsel %vm230, %v210, 0
      %v235 = vsel %vm230, %v211, 0
      %v238 = vsel %vm230, %v212, 0
      %v241 = vsel %vm230, %v213, 0
      %v244 = vsel %vm230, %v214, 0
      %v247 = vsel %vm230, %v215, 0
      %v250 = vsel %vm230, %v216, 0
      %v253 = vsel %vm230, %v217, 0
      %vm255 = vcmask 1043456
      %v257 = vsel %vm255, %v222, 0
      %259 = vmatprep.subr.mxu0 0.0
      %260 = vmatpush1.msra.mxu0 %v218
      %261 = vmatprep.subr.mxu0 0.0
      %262 = vmatpush1.msra.mxu0 %v219
      %263 = vmatprep.subr.mxu0 0.0
      %264 = vmatpush1.msra.mxu0 %v220
      %265 = vmatprep.subr.mxu0 0.0
      %266 = vmatpush1.msra.mxu0 %v221
      %267 = vmatprep.subr.mxu0 0.0
      %268 = vmatpush1.msra.mxu0 %v257
      %269 = vmatprep.subr.mxu0 0.0
      %270 = vmatpush1.msra.mxu0 0.0
      %271 = vmatprep.subr.mxu0 0.0
      %272 = vmatpush1.msra.mxu0 0.0
      %273 = vmatprep.subr.mxu0 0.0
      %274 = vmatpush1.msra.mxu0 0.0
      %275 = vmatprep.subr.mxu0 0.0
      %276 = vmatpush1.msra.mxu0 0.0
      %277 = vmatprep.subr.mxu0 0.0
      %278 = vmatpush1.msra.mxu0 0.0
      %279 = vmatprep.subr.mxu0 0.0
      %280 = vmatpush1.msra.mxu0 0.0
      %281 = vmatprep.subr.mxu0 0.0
      %282 = vmatpush1.msra.mxu0 0.0
      %283 = vmatprep.subr.mxu0 0.0
      %284 = vmatpush1.msra.mxu0 0.0
      %285 = vmatprep.subr.mxu0 0.0
      %286 = vmatpush1.msra.mxu0 0.0
      %287 = vmatprep.subr.mxu0 0.0
      %288 = vmatpush1.msra.mxu0 0.0
      %289 = vmatprep.subr.mxu0 0.0
      %290 = vmatpush1.msra.mxu0 0.0
      %291 = vmatprep.subr.mxu0 0.0
      %292 = vmatpush1.msra.mxu0 0.0
      %293 = vmatprep.subr.mxu0 0.0
      %294 = vmatpush1.msra.mxu0 0.0
      %295 = vmatprep.subr.mxu0 0.0
      %296 = vmatpush1.msra.mxu0 0.0
      %297 = vmatprep.subr.mxu0 0.0
      %298 = vmatpush1.msra.mxu0 0.0
      %299 = vmatprep.subr.mxu0 0.0
      %300 = vmatpush1.msra.mxu0 0.0
      %301 = vmatprep.subr.mxu0 0.0
      %302 = vmatpush1.msra.mxu0 0.0
      %303 = vmatprep.subr.mxu0 0.0
      %304 = vmatpush1.msra.mxu0 0.0
      %305 = vmatprep.subr.mxu0 0.0
      %306 = vmatpush1.msra.mxu0 0.0
      %307 = vmatprep.subr.mxu0 0.0
      %308 = vmatpush1.msra.mxu0 0.0
      %309 = vmatprep.subr.mxu0 0.0
      %310 = vmatpush1.msra.mxu0 0.0
      %311 = vmatprep.subr.mxu0 0.0
      %312 = vmatpush1.msra.mxu0 0.0
      %313 = vmatprep.subr.mxu0 0.0
      %314 = vmatpush1.msra.mxu0 0.0
      %315 = vmatprep.subr.mxu0 0.0
      %316 = vmatpush1.msra.mxu0 0.0
      %317 = vmatprep.subr.mxu0 0.0
      %318 = vmatpush1.msra.mxu0 0.0
      %319 = vmatprep.subr.mxu0 0.0
      %320 = vmatpush1.msra.mxu0 0.0
      %321 = vmatprep.subr.mxu0 0.0
      %322 = vmatpush1.msra.mxu0 0.0
      %323 = vmatprep.mubr.f32.mxu0 0.0
      %324 = vmatmul.mubr.f32.gmra.mrb[0].mxu0 %v232
      %v325 = vpop.f32.mrb[0].mxu0
      %v326 = vadd.f32 %v228, %v325
      %v327 = vpop.f32.mrb[0].mxu0
      %328 = vmatprep.mubr.f32.mxu0 0.0
      %329 = vmatmul.mubr.f32.gmra.mrb[0].mxu0 %v235
      %v330 = vpop.f32.mrb[0].mxu0
      %v331 = vadd.f32 %v228, %v330
      %v332 = vpop.f32.mrb[0].mxu0
      %333 = vmatprep.mubr.f32.mxu0 0.0
      %334 = vmatmul.mubr.f32.gmra.mrb[0].mxu0 %v238
      %v335 = vpop.f32.mrb[0].mxu0
      %v336 = vadd.f32 %v228, %v335
      %v337 = vpop.f32.mrb[0].mxu0
      %338 = vmatprep.mubr.f32.mxu0 0.0
      %339 = vmatmul.mubr.f32.gmra.mrb[0].mxu0 %v241
      %v340 = vpop.f32.mrb[0].mxu0
      %v341 = vadd.f32 %v228, %v340
      %v342 = vpop.f32.mrb[0].mxu0
      %343 = vmatprep.mubr.f32.mxu0 0.0
      %344 = vmatmul.mubr.f32.gmra.mrb[0].mxu0 %v244
      %v345 = vpop.f32.mrb[0].mxu0
      %v346 = vadd.f32 %v228, %v345
      %v347 = vpop.f32.mrb[0].mxu0
      %348 = vmatprep.mubr.f32.mxu0 0.0
      %349 = vmatmul.mubr.f32.gmra.mrb[0].mxu0 %v247
      %v350 = vpop.f32.mrb[0].mxu0
      %v351 = vadd.f32 %v228, %v350
      %v352 = vpop.f32.mrb[0].mxu0
      %353 = vmatprep.mubr.f32.mxu0 0.0
      %354 = vmatmul.mubr.f32.gmra.mrb[0].mxu0 %v250
      %v355 = vpop.f32.mrb[0].mxu0
      %v356 = vadd.f32 %v228, %v355
      %v357 = vpop.f32.mrb[0].mxu0
      %358 = vmatprep.mubr.f32.mxu0 0.0
      %359 = vmatmul.mubr.f32.gmra.mrb[0].mxu0 %v253
      %v360 = vpop.f32.mrb[0].mxu0
      %v361 = vadd.f32 %v228, %v360
      %v362 = vpop.f32.mrb[0].mxu0
      %363 = vdwg.mxu0
      %vm364 = vcmp.gt.f32.partialorder %v326, 0.0
      %vm365 = vcmp.gt.f32.partialorder %v331, 0.0
      %vm366 = vcmp.gt.f32.partialorder %v336, 0.0
      %vm367 = vcmp.gt.f32.partialorder %v341, 0.0
      %vm368 = vcmp.gt.f32.partialorder %v346, 0.0
      %vm369 = vcmp.gt.f32.partialorder %v351, 0.0
      %vm370 = vcmp.gt.f32.partialorder %v356, 0.0
      %vm371 = vcmp.gt.f32.partialorder %v361, 0.0
      %v372 = vmul.f32 %v326, 0.01
      %v373 = vmul.f32 %v331, 0.01
      %v374 = vmul.f32 %v336, 0.01
      %v375 = vmul.f32 %v341, 0.01
      %v376 = vmul.f32 %v346, 0.01
      %v377 = vmul.f32 %v351, 0.01
      %v378 = vmul.f32 %v356, 0.01
      %v379 = vmul.f32 %v361, 0.01
      %v380 = vsel %vm364, %v326, %v372
      %v381 = vsel %vm365, %v331, %v373
      %v382 = vsel %vm366, %v336, %v374
      %v383 = vsel %vm367, %v341, %v375
      %v384 = vsel %vm368, %v346, %v376
      %v385 = vsel %vm369, %v351, %v377
      %v386 = vsel %vm370, %v356, %v378
      %v387 = vsel %vm371, %v361, %v379
      %vm388 = vcmask 261120
      %389 = vst.msk [vmem:[%s208] sm:$0xff] %vm388, %v380
      %390 = vst.msk [vmem:[%s208 + $0x8] sm:$0xff] %vm388, %v381
      %391 = vst.msk [vmem:[%s208 + $0x10] sm:$0xff] %vm388, %v382
      %392 = vst.msk [vmem:[%s208 + $0x18] sm:$0xff] %vm388, %v383
      %393 = vst.msk [vmem:[%s208 + $0x20] sm:$0xff] %vm388, %v384
      %394 = vst.msk [vmem:[%s208 + $0x28] sm:$0xff] %vm388, %v385
      %395 = vst.msk [vmem:[%s208 + $0x30] sm:$0xff] %vm388, %v386
      %396 = vst.msk [vmem:[%s208 + $0x38] sm:$0xff] %vm388, %v387
      %s397 = smul.u32 8, %s19
      %p398 = scmp.lt.s32.totalorder %s18, 1
      %s399 = scalar_select %p398, %s18, 1
      %p400 = scmp.lt.s32.totalorder %s397, 7
      %s401 = scalar_select %p400, %s397, 7
      %s402 = smul.addr %s399, 8
      %s403 = sadd.s32 %s401, %s402
      %s404 = smul.addr %s403, 8
      %s405 = scalar_lea.vmem %s3, %s404
      // Predicated region
      $region33: #{tpu_custom_call.1} parent=31 // pred_check
        %p406 = pneg %p116
      $region34: #{tpu_custom_call.1} parent=31 // pred_check_branch
        %408 = sbr.rel (%p406) target = $region36
      $region35: #{tpu_custom_call.1} parent=31 // pred_region
        %s409 = smul.u32 8, %s19
      $region36: #{tpu_custom_call.1} parent=31 // pred_fallthru
        _
    $region32: #{tpu_custom_call.1} parent=5 // pred_fallthru
      _
    %p410 = scmp.le.s32.totalorder 2, %s9
    // Predicated region
    $region37: #{tpu_custom_call.1} parent=5 // pred_check
      %p411 = pneg %p410
    $region38: #{tpu_custom_call.1} parent=5 // pred_check_branch
      %413 = sbr.rel (%p411) target = $region40
    $region39: #{tpu_custom_call.1} parent=5 // pred_region
      %s414 = ssub.s32 %s9, 2
      // Predicated region
      $region41: #{tpu_custom_call.1} parent=39 // pred_check
        %p415 = pneg %p122
      $region42: #{tpu_custom_call.1} parent=39 // pred_check_branch
        %417 = sbr.rel (%p415) target = $region44
      $region43: #{tpu_custom_call.1} parent=39 // pred_region
        %s418 = smul.u32 8, %s21
        %p419 = scmp.lt.s32.totalorder %s20, 1
        %s420 = scalar_select %p419, %s20, 1
        %p421 = scmp.lt.s32.totalorder %s418, 7
        %s422 = scalar_select %p421, %s418, 7
        %s423 = smul.addr %s420, 8
        %s424 = sadd.s32 %s422, %s423
        %s425 = smul.addr %s424, 8
        %s426 = scalar_lea.vmem %s3, %s425
      $region44: #{tpu_custom_call.1} parent=39 // pred_fallthru
        _
    $region40: #{tpu_custom_call.1} parent=5 // pred_fallthru
      _
  $region6: #{tpu_custom_call.1} parent=0 // loop_footer
    %s13 = sadd.s32 1, %s9
  $region7: #{tpu_custom_call.1} parent=0 // loop_footer_branch
    %8 = sbr.rel target = $region3
  $region8: #{tpu_custom_call.1} parent=0 // loop_exit
    _

</llo_original>
